<compile_context>
chip_gen: v6e
topology: v6e:2x2x1
jax: 0.10.0
libtpu: 0.0.40
codegen_flags: <defaults>
</compile_context>

<pallas_src>
import functools
import math

import jax
import jax.numpy as jnp
from jax.experimental import pallas as pl
from jax.experimental.pallas import tpu as pltpu


def _round_up(x: int, m: int) -> int:
    return ((x + m - 1) // m) * m


def _pad2d(a, rows, cols):
    if a.shape == (rows, cols):
        return a
    out = jnp.zeros((rows, cols), a.dtype)
    return out.at[: a.shape[0], : a.shape[1]].set(a)


def _dual_tensorcore_chip() -> bool:
    """True on chips whose TensorCores are fed by one jax device (v7x)."""
    try:
        kind = jax.devices()[0].device_kind.lower()
        return ("v7" in kind) or ("7x" in kind)
    except Exception:  # pragma: no cover - defensive
        return False


def canonise(pc):
    # Matches CanonizationMLP._canonise with the key computed in float32
    # (same composite key as the PyTorch module).
    # TODO(synk): argsort has no Pallas TPU equivalent; kept in XLA.  Note
    # jnp.argsort is stable while torch.argsort defaults to unstable, so exact
    # key ties may order differently (benign for distinct keys).
    key = pc[:, :, 0] * 100000000.0 + pc[:, :, 1] * 10000.0 + pc[:, :, 2]
    idx = jnp.argsort(key, axis=1)
    return jnp.take_along_axis(pc, idx[:, :, None], axis=1)


def mlp_kernel(x_ref, w1_ref, b1_ref, w2_ref, b2_ref, w3_ref, b3_ref, o_ref,
               *, act_dtype):
    """Fused 3-layer MLP (Linear->ReLU->Linear->ReLU->Linear) on one row tile."""
    # Inputs/weights already arrive in the compute dtype (bf16 or f32); the
    # only per-step casts are the unavoidable f32-acc -> bf16 ones between
    # layers when feeding the MXU in bf16.
    h1 = jnp.dot(x_ref[...], w1_ref[...],
                 preferred_element_type=jnp.float32) + b1_ref[...]
    h1 = jnp.maximum(h1, 0.0).astype(act_dtype)

    h2 = jnp.dot(h1, w2_ref[...],
                 preferred_element_type=jnp.float32) + b2_ref[...]
    h2 = jnp.maximum(h2, 0.0).astype(act_dtype)

    out = jnp.dot(h2, w3_ref[...],
                  preferred_element_type=jnp.float32) + b3_ref[...]
    o_ref[...] = out.astype(o_ref.dtype)


def prepare_params(params, *, use_bf16=True):
    """Pad (and optionally cast to bf16) the MLP weights ONCE, outside the
    per-call path.  Weights are (in, out) = transpose of nn.Linear layout."""
    w1, b1, w2, b2, w3, b3 = params
    in_features = w1.shape[0]
    k_pad = _round_up(in_features, 8)          # sublane alignment only; no K lane padding
    h1_pad = _round_up(w1.shape[1], 128)
    h2_pad = _round_up(w2.shape[1], 128)
    n_pad = _round_up(w3.shape[1], 128)

    wdt = jnp.bfloat16 if use_bf16 else jnp.float32
    w1_p = _pad2d(w1, k_pad, h1_pad).astype(wdt)
    w2_p = _pad2d(w2, h1_pad, h2_pad).astype(wdt)
    w3_p = _pad2d(w3, h2_pad, n_pad).astype(wdt)
    # Biases stay f32: they are added to the f32 MXU accumulator.
    b1_p = _pad2d(b1.reshape(1, -1), 1, h1_pad).astype(jnp.float32)
    b2_p = _pad2d(b2.reshape(1, -1), 1, h2_pad).astype(jnp.float32)
    b3_p = _pad2d(b3.reshape(1, -1), 1, n_pad).astype(jnp.float32)

    return {
        "weights": (w1_p, b1_p, w2_p, b2_p, w3_p, b3_p),
        "in_features": in_features,
        "n_classes": w3.shape[1],
        "use_bf16": bool(use_bf16),
    }


def canonization_mlp(x, prepared, *, max_block_b=512, min_grid_steps=None):
    """x: (B, N, 3) float32; prepared: output of prepare_params()."""
    w1_p, b1_p, w2_p, b2_p, w3_p, b3_p = prepared["weights"]
    in_features = prepared["in_features"]
    n_classes = prepared["n_classes"]
    use_bf16 = prepared["use_bf16"]

    B, N, _ = x.shape
    assert N * 3 == in_features, "input point count does not match the MLP"

    k_pad = w1_p.shape[0]
    h1_pad = w1_p.shape[1]
    h2_pad = w2_p.shape[1]
    n_pad = w3_p.shape[1]

    # --- batch tiling: minimise padding, >=2 steps only where it buys a TC ---
    if min_grid_steps is None:
        min_grid_steps = 2 if _dual_tensorcore_chip() else 1
    b8 = _round_up(B, 8)
    n_steps = max(min_grid_steps, -(-b8 // max_block_b))
    block_b = _round_up(-(-b8 // n_steps), 8)
    b_pad = block_b * n_steps
    grid = (n_steps,)

    # --- producer: canonise + flatten + cast + pad, fused by XLA ---
    act_dt = jnp.bfloat16 if use_bf16 else jnp.float32
    xc = canonise(x).reshape(B, -1).astype(act_dt)        # (B, N*3)
    xc_p = _pad2d(xc, b_pad, k_pad)                        # no-op if already aligned

    kernel = functools.partial(mlp_kernel, act_dtype=act_dt)

    out_p = pl.pallas_call(
        kernel,
        out_shape=jax.ShapeDtypeStruct((b_pad, n_pad), jnp.float32),
        grid_spec=pltpu.PrefetchScalarGridSpec(
            num_scalar_prefetch=0,
            grid=grid,
            in_specs=[
                # x tile: last dim spans the full (unpadded-to-128) K axis.
                pl.BlockSpec((block_b, k_pad), lambda i: (i, 0)),
                pl.BlockSpec((k_pad, h1_pad), lambda i: (0, 0)),
                pl.BlockSpec((1, h1_pad), lambda i: (0, 0)),
                pl.BlockSpec((h1_pad, h2_pad), lambda i: (0, 0)),
                pl.BlockSpec((1, h2_pad), lambda i: (0, 0)),
                pl.BlockSpec((h2_pad, n_pad), lambda i: (0, 0)),
                pl.BlockSpec((1, n_pad), lambda i: (0, 0)),
            ],
            out_specs=pl.BlockSpec((block_b, n_pad), lambda i: (i, 0)),
        ),
        compiler_params=pltpu.CompilerParams(
            dimension_semantics=("parallel",),
        ),
    )(xc_p, w1_p, b1_p, w2_p, b2_p, w3_p, b3_p)

    # Discard batch / class padding (padded rows hold ReLU(bias) garbage).
    return out_p[:B, :n_classes]


def init_params(key, in_features, hidden_dims, n_classes):
    """Deterministic init mimicking nn.Linear default (U(-1/sqrt(fan_in), +))."""
    dims = [in_features] + list(hidden_dims) + [n_classes]
    params = []
    for i in range(len(dims) - 1):
        key, kw, kb = jax.random.split(key, 3)
        fan_in = dims[i]
        bound = 1.0 / math.sqrt(fan_in)
        w = jax.random.uniform(kw, (dims[i], dims[i + 1]), jnp.float32, -bound, bound)
        b = jax.random.uniform(kb, (1, dims[i + 1]), jnp.float32, -bound, bound)
        params.extend([w, b])
    return params


def reference_forward(x, params):
    """Pure-JAX f32 reference for correctness checking."""
    w1, b1, w2, b2, w3, b3 = params
    xc = canonise(x).reshape(x.shape[0], -1)
    h1 = jnp.maximum(xc @ w1 + b1, 0.0)
    h2 = jnp.maximum(h1 @ w2 + b2, 0.0)
    return h2 @ w3 + b3


if __name__ == "__main__":
    # Point clouds of 64 points (xyz).  B=200 exercises batch tiling/padding:
    # batch pads to 208 rows (1 grid step on v5e/v6e, 2 parallel steps on v7x).
    B, N = 200, 64
    hidden_dims = (256, 128)
    n_classes = 40
    in_features = N * 3

    key = jax.random.PRNGKey(0)
    kx, kp = jax.random.split(key)
    x = jax.random.normal(kx, (B, N, 3), dtype=jnp.float32)
    params = init_params(kp, in_features, hidden_dims, n_classes)

    ref = reference_forward(x, params)

    # f32 path: tight correctness check.
    prep_f32 = prepare_params(params, use_bf16=False)
    out_f32 = jax.block_until_ready(canonization_mlp(x, prep_f32))
    assert out_f32.shape == (B, n_classes)
    err_f32 = float(jnp.max(jnp.abs(out_f32 - ref)))
    assert jnp.allclose(out_f32, ref, atol=1e-3, rtol=1e-3), (
        f"f32 path mismatch vs JAX reference, max_err={err_f32}")

    # bf16 fast path (default): looser tolerance for bf16 input/weight rounding.
    prep_bf16 = prepare_params(params, use_bf16=True)
    out_bf16 = jax.block_until_ready(canonization_mlp(x, prep_bf16))
    assert out_bf16.shape == (B, n_classes)
    err_bf16 = float(jnp.max(jnp.abs(out_bf16 - ref)))
    assert jnp.allclose(out_bf16, ref, atol=1e-1, rtol=5e-2), (
        f"bf16 path mismatch vs JAX reference, max_err={err_bf16}")

    print("KERNEL_OK")
</pallas_src>

<mosaic_0001>
module attributes {stable_mosaic.version = 11 : i64} {
  func.func @mlp_kernel(%arg0: i32, %arg1: memref<200x192xf32, #tpu.memory_space<vmem>>, %arg2: memref<192x256xf32, #tpu.memory_space<vmem>>, %arg3: memref<1x256xf32, #tpu.memory_space<vmem>>, %arg4: memref<256x128xf32, #tpu.memory_space<vmem>>, %arg5: memref<1x128xf32, #tpu.memory_space<vmem>>, %arg6: memref<128x128xf32, #tpu.memory_space<vmem>>, %arg7: memref<1x128xf32, #tpu.memory_space<vmem>>, %arg8: memref<200x128xf32, #tpu.memory_space<vmem>>) attributes {dimension_semantics = [#tpu.dimension_semantics<parallel>], iteration_bounds = array<i64: 1>, scalar_prefetch = 0 : i64, scratch_operands = 0 : i64, tpu.core_type = #tpu.core_type<tc>, window_params = [{transform_indices = @transform_0, window_bounds = array<i64: 200, 192>}, {pipeline_mode = #tpu.pipeline_mode<synchronous>, transform_indices = @transform_1, window_bounds = array<i64: 192, 256>}, {pipeline_mode = #tpu.pipeline_mode<synchronous>, transform_indices = @transform_2, window_bounds = array<i64: 1, 256>}, {pipeline_mode = #tpu.pipeline_mode<synchronous>, transform_indices = @transform_3, window_bounds = array<i64: 256, 128>}, {pipeline_mode = #tpu.pipeline_mode<synchronous>, transform_indices = @transform_4, window_bounds = array<i64: 1, 128>}, {pipeline_mode = #tpu.pipeline_mode<synchronous>, transform_indices = @transform_5, window_bounds = array<i64: 128, 128>}, {pipeline_mode = #tpu.pipeline_mode<synchronous>, transform_indices = @transform_6, window_bounds = array<i64: 1, 128>}, {transform_indices = @transform_7, window_bounds = array<i64: 200, 128>}]} {
    %c0 = arith.constant 0 : index
    %c0_0 = arith.constant 0 : index
    %0 = vector.load %arg1[%c0, %c0_0] : memref<200x192xf32, #tpu.memory_space<vmem>>, vector<200x192xf32>
    %c0_1 = arith.constant 0 : index
    %c0_2 = arith.constant 0 : index
    %1 = vector.load %arg2[%c0_1, %c0_2] : memref<192x256xf32, #tpu.memory_space<vmem>>, vector<192x256xf32>
    %cst = arith.constant dense<0.000000e+00> : vector<200x256xf32>
    %2 = tpu.matmul %0, %1, %cst {dimension_numbers = #tpu.dot_dimension_numbers<[1], [0], [0], [1], [0, 0, 1, 1], [], []>} : vector<200x192xf32>, vector<192x256xf32>, vector<200x256xf32> -> vector<200x256xf32>
    %c0_3 = arith.constant 0 : index
    %c0_4 = arith.constant 0 : index
    %3 = vector.load %arg3[%c0_3, %c0_4] : memref<1x256xf32, #tpu.memory_space<vmem>>, vector<1x256xf32>
    %4 = vector.broadcast %3 : vector<1x256xf32> to vector<200x256xf32>
    %5 = arith.addf %2, %4 : vector<200x256xf32>
    %cst_5 = arith.constant 0.000000e+00 : f32
    %6 = vector.broadcast %cst_5 : f32 to vector<200x256xf32>
    %7 = arith.maximumf %5, %6 : vector<200x256xf32>
    %c0_6 = arith.constant 0 : index
    %c0_7 = arith.constant 0 : index
    %8 = vector.load %arg4[%c0_6, %c0_7] : memref<256x128xf32, #tpu.memory_space<vmem>>, vector<256x128xf32>
    %cst_8 = arith.constant dense<0.000000e+00> : vector<200x128xf32>
    %9 = tpu.matmul %7, %8, %cst_8 {dimension_numbers = #tpu.dot_dimension_numbers<[1], [0], [0], [1], [0, 0, 1, 1], [], []>} : vector<200x256xf32>, vector<256x128xf32>, vector<200x128xf32> -> vector<200x128xf32>
    %c0_9 = arith.constant 0 : index
    %c0_10 = arith.constant 0 : index
    %10 = vector.load %arg5[%c0_9, %c0_10] : memref<1x128xf32, #tpu.memory_space<vmem>>, vector<1x128xf32>
    %11 = vector.broadcast %10 : vector<1x128xf32> to vector<200x128xf32>
    %12 = arith.addf %9, %11 : vector<200x128xf32>
    %cst_11 = arith.constant 0.000000e+00 : f32
    %13 = vector.broadcast %cst_11 : f32 to vector<200x128xf32>
    %14 = arith.maximumf %12, %13 : vector<200x128xf32>
    %c0_12 = arith.constant 0 : index
    %c0_13 = arith.constant 0 : index
    %15 = vector.load %arg6[%c0_12, %c0_13] : memref<128x128xf32, #tpu.memory_space<vmem>>, vector<128x128xf32>
    %cst_14 = arith.constant dense<0.000000e+00> : vector<200x128xf32>
    %16 = tpu.matmul %14, %15, %cst_14 {dimension_numbers = #tpu.dot_dimension_numbers<[1], [0], [0], [1], [0, 0, 1, 1], [], []>} : vector<200x128xf32>, vector<128x128xf32>, vector<200x128xf32> -> vector<200x128xf32>
    %c0_15 = arith.constant 0 : index
    %c0_16 = arith.constant 0 : index
    %17 = vector.load %arg7[%c0_15, %c0_16] : memref<1x128xf32, #tpu.memory_space<vmem>>, vector<1x128xf32>
    %18 = vector.broadcast %17 : vector<1x128xf32> to vector<200x128xf32>
    %19 = arith.addf %16, %18 : vector<200x128xf32>
    %c0_17 = arith.constant 0 : index
    %c0_18 = arith.constant 0 : index
    %20 = vector.load %arg8[%c0_17, %c0_18] : memref<200x128xf32, #tpu.memory_space<vmem>>, vector<200x128xf32>
    tpu.vector_store %arg8[%c0_17, %c0_18], %19 {strides = array<i32>} : memref<200x128xf32, #tpu.memory_space<vmem>>, vector<200x128xf32>,
    return
  }
  func.func @transform_0(%arg0: i32) -> (i32, i32) {
    %c0_i32 = arith.constant 0 : i32
    %c0_i32_0 = arith.constant 0 : i32
    return %arg0, %c0_i32 : i32, i32
  }
  func.func @transform_1(%arg0: i32) -> (i32, i32) {
    %c0_i32 = arith.constant 0 : i32
    %c0_i32_0 = arith.constant 0 : i32
    %c0_i32_1 = arith.constant 0 : i32
    return %c0_i32, %c0_i32_0 : i32, i32
  }
  func.func @transform_2(%arg0: i32) -> (i32, i32) {
    %c0_i32 = arith.constant 0 : i32
    %c0_i32_0 = arith.constant 0 : i32
    %c0_i32_1 = arith.constant 0 : i32
    return %c0_i32, %c0_i32_0 : i32, i32
  }
  func.func @transform_3(%arg0: i32) -> (i32, i32) {
    %c0_i32 = arith.constant 0 : i32
    %c0_i32_0 = arith.constant 0 : i32
    %c0_i32_1 = arith.constant 0 : i32
    return %c0_i32, %c0_i32_0 : i32, i32
  }
  func.func @transform_4(%arg0: i32) -> (i32, i32) {
    %c0_i32 = arith.constant 0 : i32
    %c0_i32_0 = arith.constant 0 : i32
    %c0_i32_1 = arith.constant 0 : i32
    return %c0_i32, %c0_i32_0 : i32, i32
  }
  func.func @transform_5(%arg0: i32) -> (i32, i32) {
    %c0_i32 = arith.constant 0 : i32
    %c0_i32_0 = arith.constant 0 : i32
    %c0_i32_1 = arith.constant 0 : i32
    return %c0_i32, %c0_i32_0 : i32, i32
  }
  func.func @transform_6(%arg0: i32) -> (i32, i32) {
    %c0_i32 = arith.constant 0 : i32
    %c0_i32_0 = arith.constant 0 : i32
    %c0_i32_1 = arith.constant 0 : i32
    return %c0_i32, %c0_i32_0 : i32, i32
  }
  func.func @transform_7(%arg0: i32) -> (i32, i32) {
    %c0_i32 = arith.constant 0 : i32
    %c0_i32_0 = arith.constant 0 : i32
    return %arg0, %c0_i32 : i32, i32
  }
}

</mosaic_0001>

<llo_original>
// kernel: tpu_custom_call.1
$region0: #{tpu_custom_call.1}
  #allocation0 [shape = 'u32[]', space=smem, size = 0x4, offset = 0x4, fixed_abs, tag = 'smem constant byte address 0x4 - core index']
  #allocation1 [shape = 'u32[144,128]{1,0:T(1,128)}', space=vmem, size = 0x12000, scoped, tag = 'internal scratch']
  %s0 = inlined_call_operand.vmem [shape: f32[200,192], index: 0, kind: input, shape index: {}]
  %s1 = inlined_call_operand.vmem [shape: f32[192,256], index: 1, kind: input, shape index: {}]
  %s2 = inlined_call_operand.vmem [shape: f32[1,256], index: 2, kind: input, shape index: {}]
  %s3 = inlined_call_operand.vmem [shape: f32[256,128], index: 3, kind: input, shape index: {}]
  %s4 = inlined_call_operand.vmem [shape: f32[1,128], index: 4, kind: input, shape index: {}]
  %s5 = inlined_call_operand.vmem [shape: f32[128,128], index: 5, kind: input, shape index: {}]
  %s6 = inlined_call_operand.vmem [shape: f32[1,128], index: 6, kind: input, shape index: {}]
  %s7 = inlined_call_operand.hbm [shape: f32[200,128], index: 7, kind: output, shape index: {}]
  %s8 = sld [smem:[#allocation0]]
  $region38: #{tpu_custom_call.1} parent=0
    _
  %s10 = ssub.s32 1, %s8
  %s11 = scalar_select 0, %s10, %s8
  $region1: #{tpu_custom_call.1} parent=0
    #allocation2 [shape = 'u8[102400]{0}', space=vmem, size = 0x19000, scoped, tag = 'output window, operand 0, single buffered']
    #allocation3 [shape = 's32[1]{0}', space=sflag, size = 0x4, scoped, tag = 'scoped memory for tpu_custom_call.1']
    %12 = vsyncpa [#allocation3], 0
    // Predicated region
    $region2: #{tpu_custom_call.1} parent=1 // pred_check
      _
    $region3: #{tpu_custom_call.1} parent=1 // pred_check_branch
      %14 = sbr.rel (0) target = $region5
    $region4: #{tpu_custom_call.1} parent=1 // pred_region
      _
    $region5: #{tpu_custom_call.1} parent=1 // pred_fallthru
      _
    // Predicated region
    $region6: #{tpu_custom_call.1} parent=1 // pred_check
      _
    $region7: #{tpu_custom_call.1} parent=1 // pred_check_branch
      %16 = sbr.rel (0) target = $region9
    $region8: #{tpu_custom_call.1} parent=1 // pred_region
      _
    $region9: #{tpu_custom_call.1} parent=1 // pred_fallthru
      _
    // Predicated region
    $region10: #{tpu_custom_call.1} parent=1 // pred_check
      _
    $region11: #{tpu_custom_call.1} parent=1 // pred_check_branch
      %18 = sbr.rel (0) target = $region13
    $region12: #{tpu_custom_call.1} parent=1 // pred_region
      _
    $region13: #{tpu_custom_call.1} parent=1 // pred_fallthru
      _
    // Predicated region
    $region14: #{tpu_custom_call.1} parent=1 // pred_check
      _
    $region15: #{tpu_custom_call.1} parent=1 // pred_check_branch
      %20 = sbr.rel (0) target = $region17
    $region16: #{tpu_custom_call.1} parent=1 // pred_region
      _
    $region17: #{tpu_custom_call.1} parent=1 // pred_fallthru
      _
    // Predicated region
    $region18: #{tpu_custom_call.1} parent=1 // pred_check
      _
    $region19: #{tpu_custom_call.1} parent=1 // pred_check_branch
      %22 = sbr.rel (0) target = $region21
    $region20: #{tpu_custom_call.1} parent=1 // pred_region
      _
    $region21: #{tpu_custom_call.1} parent=1 // pred_fallthru
      _
    // Predicated region
    $region22: #{tpu_custom_call.1} parent=1 // pred_check
      _
    $region23: #{tpu_custom_call.1} parent=1 // pred_check_branch
      %24 = sbr.rel (0) target = $region25
    $region24: #{tpu_custom_call.1} parent=1 // pred_region
      _
    $region25: #{tpu_custom_call.1} parent=1 // pred_fallthru
      _
    // Predicated region
    $region26: #{tpu_custom_call.1} parent=1 // pred_check
      _
    $region27: #{tpu_custom_call.1} parent=1 // pred_check_branch
      %26 = sbr.rel (0) target = $region29
    $region28: #{tpu_custom_call.1} parent=1 // pred_region
      _
    $region29: #{tpu_custom_call.1} parent=1 // pred_fallthru
      _
    %v27 = vld [vmem:[%s0] sm:$0xff]
    %v28 = vld [vmem:[%s0 + $0x8] sm:$0xff]
    %v29 = vld [vmem:[%s0 + $0x10] sm:$0xff]
    %v30 = vld [vmem:[%s0 + $0x18] sm:$0xff]
    %v31 = vld [vmem:[%s0 + $0x20] sm:$0xff]
    %v32 = vld [vmem:[%s0 + $0x28] sm:$0xff]
    %v33 = vld [vmem:[%s0 + $0x30] sm:$0xff]
    %v34 = vld [vmem:[%s0 + $0x38] sm:$0xff]
    %v35 = vld [vmem:[%s0 + $0x40] sm:$0xff]
    %v36 = vld [vmem:[%s0 + $0x48] sm:$0xff]
    %v37 = vld [vmem:[%s0 + $0x50] sm:$0xff]
    %v38 = vld [vmem:[%s0 + $0x58] sm:$0xff]
    %v39 = vld [vmem:[%s0 + $0x60] sm:$0xff]
    %v40 = vld [vmem:[%s0 + $0x68] sm:$0xff]
    %v41 = vld [vmem:[%s0 + $0x70] sm:$0xff]
    %v42 = vld [vmem:[%s0 + $0x78] sm:$0xff]
    %v43 = vld [vmem:[%s0 + $0x80] sm:$0xff]
    %v44 = vld [vmem:[%s0 + $0x88] sm:$0xff]
    %v45 = vld [vmem:[%s0 + $0x90] sm:$0xff]
    %v46 = vld [vmem:[%s0 + $0x98] sm:$0xff]
    %v47 = vld [vmem:[%s0 + $0xa0] sm:$0xff]
    %v48 = vld [vmem:[%s0 + $0xa8] sm:$0xff]
    %v49 = vld [vmem:[%s0 + $0xb0] sm:$0xff]
    %v50 = vld [vmem:[%s0 + $0xb8] sm:$0xff]
    %v51 = vld [vmem:[%s0 + $0xc0] sm:$0xff]
    %v52 = vld [vmem:[%s0 + $0xc8] sm:$0xff]
    %v53 = vld [vmem:[%s0 + $0xd0] sm:$0xff]
    %v54 = vld [vmem:[%s0 + $0xd8] sm:$0xff]
    %v55 = vld [vmem:[%s0 + $0xe0] sm:$0xff]
    %v56 = vld [vmem:[%s0 + $0xe8] sm:$0xff]
    %v57 = vld [vmem:[%s0 + $0xf0] sm:$0xff]
    %v58 = vld [vmem:[%s0 + $0xf8] sm:$0xff]
    %v59 = vld [vmem:[%s0 + $0x100] sm:$0xff]
    %v60 = vld [vmem:[%s0 + $0x108] sm:$0xff]
    %v61 = vld [vmem:[%s0 + $0x110] sm:$0xff]
    %v62 = vld [vmem:[%s0 + $0x118] sm:$0xff]
    %v63 = vld [vmem:[%s0 + $0x120] sm:$0xff]
    %v64 = vld [vmem:[%s0 + $0x128] sm:$0xff]
    %v65 = vld [vmem:[%s0 + $0x130] sm:$0xff]
    %v66 = vld [vmem:[%s0 + $0x138] sm:$0xff]
    %v67 = vld [vmem:[%s0 + $0x140] sm:$0xff]
    %v68 = vld [vmem:[%s0 + $0x148] sm:$0xff]
    %v69 = vld [vmem:[%s0 + $0x150] sm:$0xff]
    %v70 = vld [vmem:[%s0 + $0x158] sm:$0xff]
    %v71 = vld [vmem:[%s0 + $0x160] sm:$0xff]
    %v72 = vld [vmem:[%s0 + $0x168] sm:$0xff]
    %v73 = vld [vmem:[%s0 + $0x170] sm:$0xff]
    %v74 = vld [vmem:[%s0 + $0x178] sm:$0xff]
    %v75 = vld [vmem:[%s0 + $0x180] sm:$0xff]
    %v76 = vld [vmem:[%s0 + $0x188] sm:$0xff]
    %v77 = vld [vmem:[%s1] sm:$0xff]
    %v78 = vld [vmem:[%s1 + $0x8] sm:$0xff]
    %v79 = vld [vmem:[%s1 + $0x10] sm:$0xff]
    %v80 = vld [vmem:[%s1 + $0x18] sm:$0xff]
    %v81 = vld [vmem:[%s1 + $0x20] sm:$0xff]
    %v82 = vld [vmem:[%s1 + $0x28] sm:$0xff]
    %v83 = vld [vmem:[%s1 + $0x30] sm:$0xff]
    %v84 = vld [vmem:[%s1 + $0x38] sm:$0xff]
    %v85 = vld [vmem:[%s1 + $0x40] sm:$0xff]
    %v86 = vld [vmem:[%s1 + $0x48] sm:$0xff]
    %v87 = vld [vmem:[%s1 + $0x50] sm:$0xff]
    %v88 = vld [vmem:[%s1 + $0x58] sm:$0xff]
    %v89 = vld [vmem:[%s1 + $0x60] sm:$0xff]
    %v90 = vld [vmem:[%s1 + $0x68] sm:$0xff]
    %v91 = vld [vmem:[%s1 + $0x70] sm:$0xff]
    %v92 = vld [vmem:[%s1 + $0x78] sm:$0xff]
    %v93 = vld [vmem:[%s1 + $0x80] sm:$0xff]
    %v94 = vld [vmem:[%s1 + $0x88] sm:$0xff]
    %v95 = vld [vmem:[%s1 + $0x90] sm:$0xff]
    %v96 = vld [vmem:[%s1 + $0x98] sm:$0xff]
    %v97 = vld [vmem:[%s1 + $0xa0] sm:$0xff]
    %v98 = vld [vmem:[%s1 + $0xa8] sm:$0xff]
    %v99 = vld [vmem:[%s1 + $0xb0] sm:$0xff]
    %v100 = vld [vmem:[%s1 + $0xb8] sm:$0xff]
    %v101 = vld [vmem:[%s1 + $0xc0] sm:$0xff]
    %v102 = vld [vmem:[%s1 + $0xc8] sm:$0xff]
    %v103 = vld [vmem:[%s1 + $0xd0] sm:$0xff]
    %v104 = vld [vmem:[%s1 + $0xd8] sm:$0xff]
    %v105 = vld [vmem:[%s1 + $0xe0] sm:$0xff]
    %v106 = vld [vmem:[%s1 + $0xe8] sm:$0xff]
    %v107 = vld [vmem:[%s1 + $0xf0] sm:$0xff]
    %v108 = vld [vmem:[%s1 + $0xf8] sm:$0xff]
    %v109 = vld [vmem:[%s1 + $0x100] sm:$0xff]
    %v110 = vld [vmem:[%s1 + $0x108] sm:$0xff]
    %v111 = vld [vmem:[%s1 + $0x110] sm:$0xff]
    %v112 = vld [vmem:[%s1 + $0x118] sm:$0xff]
    %v113 = vld [vmem:[%s1 + $0x120] sm:$0xff]
    %v114 = vld [vmem:[%s1 + $0x128] sm:$0xff]
    %v115 = vld [vmem:[%s1 + $0x130] sm:$0xff]
    %v116 = vld [vmem:[%s1 + $0x138] sm:$0xff]
    %v117 = vld [vmem:[%s1 + $0x140] sm:$0xff]
    %v118 = vld [vmem:[%s1 + $0x148] sm:$0xff]
    %v119 = vld [vmem:[%s1 + $0x150] sm:$0xff]
    %v120 = vld [vmem:[%s1 + $0x158] sm:$0xff]
    %v121 = vld [vmem:[%s1 + $0x160] sm:$0xff]
    %v122 = vld [vmem:[%s1 + $0x168] sm:$0xff]
    %v123 = vld [vmem:[%s1 + $0x170] sm:$0xff]
    %v124 = vld [vmem:[%s1 + $0x178] sm:$0xff]
    %v125 = vld [vmem:[%s2] sm:$0x3]
    %v127 = vlaneseq
    %v128 = vshrl.u32 %v127, 7
    %v129 = vsub.s32 0, %v128
    %v130 = vrot.slane %v125, %v129
    %v131 = vlaneseq
    %v132 = vshrl.u32 %v131, 7
    %v133 = vsub.s32 1, %v132
    %v134 = vrot.slane %v125, %v133
    %vm137 = vcmask 523264
    %v139 = vsel %vm137, %v28, 0
    %v142 = vsel %vm137, %v30, 0
    %v145 = vsel %vm137, %v32, 0
    %v148 = vsel %vm137, %v34, 0
    %v151 = vsel %vm137, %v36, 0
    %v154 = vsel %vm137, %v38, 0
    %v157 = vsel %vm137, %v40, 0
    %v160 = vsel %vm137, %v42, 0
    %v163 = vsel %vm137, %v44, 0
    %v166 = vsel %vm137, %v46, 0
    %v169 = vsel %vm137, %v48, 0
    %v172 = vsel %vm137, %v50, 0
    %v175 = vsel %vm137, %v52, 0
    %v178 = vsel %vm137, %v54, 0
    %v181 = vsel %vm137, %v56, 0
    %v184 = vsel %vm137, %v58, 0
    %v187 = vsel %vm137, %v60, 0
    %v190 = vsel %vm137, %v62, 0
    %v193 = vsel %vm137, %v64, 0
    %v196 = vsel %vm137, %v66, 0
    %v199 = vsel %vm137, %v68, 0
    %v202 = vsel %vm137, %v70, 0
    %v205 = vsel %vm137, %v72, 0
    %v208 = vsel %vm137, %v74, 0
    %v211 = vsel %vm137, %v76, 0
    %213 = vmatprep.subr.mxu0 %v108
    %214 = vmatpush1.msra.mxu0 %v107
    %215 = vmatprep.subr.mxu0 %v106
    %216 = vmatpush1.msra.mxu0 %v105
    %217 = vmatprep.subr.mxu0 %v104
    %218 = vmatpush1.msra.mxu0 %v103
    %219 = vmatprep.subr.mxu0 %v102
    %220 = vmatpush1.msra.mxu0 %v101
    %221 = vmatprep.subr.mxu0 %v100
    %222 = vmatpush1.msra.mxu0 %v99
    %223 = vmatprep.subr.mxu0 %v98
    %224 = vmatpush1.msra.mxu0 %v97
    %225 = vmatprep.subr.mxu0 %v96
    %226 = vmatpush1.msra.mxu0 %v95
    %227 = vmatprep.subr.mxu0 %v94
    %228 = vmatpush1.msra.mxu0 %v93
    %229 = vmatprep.subr.mxu0 %v92
    %230 = vmatpush1.msra.mxu0 %v91
    %231 = vmatprep.subr.mxu0 %v90
    %232 = vmatpush1.msra.mxu0 %v89
    %233 = vmatprep.subr.mxu0 %v88
    %234 = vmatpush1.msra.mxu0 %v87
    %235 = vmatprep.subr.mxu0 %v86
    %236 = vmatpush1.msra.mxu0 %v85
    %237 = vmatprep.subr.mxu0 %v84
    %238 = vmatpush1.msra.mxu0 %v83
    %239 = vmatprep.subr.mxu0 %v82
    %240 = vmatpush1.msra.mxu0 %v81
    %241 = vmatprep.subr.mxu0 %v80
    %242 = vmatpush1.msra.mxu0 %v79
    %243 = vmatprep.subr.mxu0 %v78
    %244 = vmatpush1.msra.mxu0 %v77
    %245 = vmatprep.subr.mxu0 0.0
    %246 = vmatpush2.msra.mxu0 0.0
    %247 = vmatprep.subr.mxu0 0.0
    %248 = vmatpush2.msra.mxu0 0.0
    %249 = vmatprep.subr.mxu0 0.0
    %250 = vmatpush2.msra.mxu0 0.0
    %251 = vmatprep.subr.mxu0 0.0
    %252 = vmatpush2.msra.mxu0 0.0
    %253 = vmatprep.subr.mxu0 0.0
    %254 = vmatpush2.msra.mxu0 0.0
    %255 = vmatprep.subr.mxu0 0.0
    %256 = vmatpush2.msra.mxu0 0.0
    %257 = vmatprep.subr.mxu0 0.0
    %258 = vmatpush2.msra.mxu0 0.0
    %259 = vmatprep.subr.mxu0 0.0
    %260 = vmatpush2.msra.mxu0 0.0
    %261 = vmatprep.subr.mxu0 %v124
    %262 = vmatpush2.msra.mxu0 %v123
    %263 = vmatprep.subr.mxu0 %v122
    %264 = vmatpush2.msra.mxu0 %v121
    %265 = vmatprep.subr.mxu0 %v120
    %266 = vmatpush2.msra.mxu0 %v119
    %267 = vmatprep.subr.mxu0 %v118
    %268 = vmatpush2.msra.mxu0 %v117
    %269 = vmatprep.subr.mxu0 %v116
    %270 = vmatpush2.msra.mxu0 %v115
    %271 = vmatprep.subr.mxu0 %v114
    %272 = vmatpush2.msra.mxu0 %v113
    %273 = vmatprep.subr.mxu0 %v112
    %274 = vmatpush2.msra.mxu0 %v111
    %275 = vmatprep.subr.mxu0 %v110
    %276 = vmatpush2.msra.mxu0 %v109
    %277 = vmatprep.mubr.f32.mxu0 %v139
    %278 = vmatmul.mubr.f32.gmra.mxu0 %v27
    %v279 = vpop.f32.mrf.mxu0
    %v280 = vadd.f32 %v130, %v279
    %v281 = vpop.f32.mrf.mxu0
    %v282 = vadd.f32 %v134, %v281
    %283 = vmatprep.mubr.f32.mxu0 %v142
    %284 = vmatmul.mubr.f32.gmra.mxu0 %v29
    %v285 = vpop.f32.mrf.mxu0
    %v286 = vadd.f32 %v130, %v285
    %v287 = vpop.f32.mrf.mxu0
    %v288 = vadd.f32 %v134, %v287
    %289 = vmatprep.mubr.f32.mxu0 %v145
    %290 = vmatmul.mubr.f32.gmra.mxu0 %v31
    %v291 = vpop.f32.mrf.mxu0
    %v292 = vadd.f32 %v130, %v291
    %v293 = vpop.f32.mrf.mxu0
    %v294 = vadd.f32 %v134, %v293
    %295 = vmatprep.mubr.f32.mxu0 %v148
    %296 = vmatmul.mubr.f32.gmra.mxu0 %v33
    %v297 = vpop.f32.mrf.mxu0
    %v298 = vadd.f32 %v130, %v297
    %v299 = vpop.f32.mrf.mxu0
    %v300 = vadd.f32 %v134, %v299
    %301 = vmatprep.mubr.f32.mxu0 %v151
    %302 = vmatmul.mubr.f32.gmra.mxu0 %v35
    %v303 = vpop.f32.mrf.mxu0
    %v304 = vadd.f32 %v130, %v303
    %v305 = vpop.f32.mrf.mxu0
    %v306 = vadd.f32 %v134, %v305
    %307 = vmatprep.mubr.f32.mxu0 %v154
    %308 = vmatmul.mubr.f32.gmra.mxu0 %v37
    %v309 = vpop.f32.mrf.mxu0
    %v310 = vadd.f32 %v130, %v309
    %v311 = vpop.f32.mrf.mxu0
    %v312 = vadd.f32 %v134, %v311
    %313 = vmatprep.mubr.f32.mxu0 %v157
    %314 = vmatmul.mubr.f32.gmra.mxu0 %v39
    %v315 = vpop.f32.mrf.mxu0
    %v316 = vadd.f32 %v130, %v315
    %v317 = vpop.f32.mrf.mxu0
    %v318 = vadd.f32 %v134, %v317
    %319 = vmatprep.mubr.f32.mxu0 %v160
    %320 = vmatmul.mubr.f32.gmra.mxu0 %v41
    %v321 = vpop.f32.mrf.mxu0
    %v322 = vadd.f32 %v130, %v321
    %v323 = vpop.f32.mrf.mxu0
    %v324 = vadd.f32 %v134, %v323
    %325 = vmatprep.mubr.f32.mxu0 %v163
    %326 = vmatmul.mubr.f32.gmra.mxu0 %v43
    %v327 = vpop.f32.mrf.mxu0
    %v328 = vadd.f32 %v130, %v327
    %v329 = vpop.f32.mrf.mxu0
    %v330 = vadd.f32 %v134, %v329
    %331 = vmatprep.mubr.f32.mxu0 %v166
    %332 = vmatmul.mubr.f32.gmra.mxu0 %v45
    %v333 = vpop.f32.mrf.mxu0
    %v334 = vadd.f32 %v130, %v333
    %v335 = vpop.f32.mrf.mxu0
    %v336 = vadd.f32 %v134, %v335
    %337 = vmatprep.mubr.f32.mxu0 %v169
    %338 = vmatmul.mubr.f32.gmra.mxu0 %v47
    %v339 = vpop.f32.mrf.mxu0
    %v340 = vadd.f32 %v130, %v339
    %v341 = vpop.f32.mrf.mxu0
    %v342 = vadd.f32 %v134, %v341
    %343 = vmatprep.mubr.f32.mxu0 %v172
    %344 = vmatmul.mubr.f32.gmra.mxu0 %v49
    %v345 = vpop.f32.mrf.mxu0
    %v346 = vadd.f32 %v130, %v345
    %v347 = vpop.f32.mrf.mxu0
    %v348 = vadd.f32 %v134, %v347
    %349 = vmatprep.mubr.f32.mxu0 %v175
    %350 = vmatmul.mubr.f32.gmra.mxu0 %v51
    %v351 = vpop.f32.mrf.mxu0
    %v352 = vadd.f32 %v130, %v351
    %v353 = vpop.f32.mrf.mxu0
    %v354 = vadd.f32 %v134, %v353
    %355 = vmatprep.mubr.f32.mxu0 %v178
    %356 = vmatmul.mubr.f32.gmra.mxu0 %v53
    %v357 = vpop.f32.mrf.mxu0
    %v358 = vadd.f32 %v130, %v357
    %v359 = vpop.f32.mrf.mxu0
    %v360 = vadd.f32 %v134, %v359
    %361 = vmatprep.mubr.f32.mxu0 %v181
    %362 = vmatmul.mubr.f32.gmra.mxu0 %v55
    %v363 = vpop.f32.mrf.mxu0
    %v364 = vadd.f32 %v130, %v363
    %v365 = vpop.f32.mrf.mxu0
    %v366 = vadd.f32 %v134, %v365
    %367 = vmatprep.mubr.f32.mxu0 %v184
    %368 = vmatmul.mubr.f32.gmra.mxu0 %v57
    %v369 = vpop.f32.mrf.mxu0
    %v370 = vadd.f32 %v130, %v369
    %v371 = vpop.f32.mrf.mxu0
    %v372 = vadd.f32 %v134, %v371
    %373 = vmatprep.mubr.f32.mxu0 %v187
    %374 = vmatmul.mubr.f32.gmra.mxu0 %v59
    %v375 = vpop.f32.mrf.mxu0
    %v376 = vadd.f32 %v130, %v375
    %v377 = vpop.f32.mrf.mxu0
    %v378 = vadd.f32 %v134, %v377
    %379 = vmatprep.mubr.f32.mxu0 %v190
    %380 = vmatmul.mubr.f32.gmra.mxu0 %v61
    %v381 = vpop.f32.mrf.mxu0
    %v382 = vadd.f32 %v130, %v381
    %v383 = vpop.f32.mrf.mxu0
    %v384 = vadd.f32 %v134, %v383
    %385 = vmatprep.mubr.f32.mxu0 %v193
    %386 = vmatmul.mubr.f32.gmra.mxu0 %v63
    %v387 = vpop.f32.mrf.mxu0
    %v388 = vadd.f32 %v130, %v387
    %v389 = vpop.f32.mrf.mxu0
    %v390 = vadd.f32 %v134, %v389
    %391 = vmatprep.mubr.f32.mxu0 %v196
    %392 = vmatmul.mubr.f32.gmra.mxu0 %v65
    %v393 = vpop.f32.mrf.mxu0
    %v394 = vadd.f32 %v130, %v393
    %v395 = vpop.f32.mrf.mxu0
    %v396 = vadd.f32 %v134, %v395
    %397 = vmatprep.mubr.f32.mxu0 %v199
    %398 = vmatmul.mubr.f32.gmra.mxu0 %v67
    %v399 = vpop.f32.mrf.mxu0
    %v400 = vadd.f32 %v130, %v399
    %v401 = vpop.f32.mrf.mxu0
    %v402 = vadd.f32 %v134, %v401
    %403 = vmatprep.mubr.f32.mxu0 %v202
    %404 = vmatmul.mubr.f32.gmra.mxu0 %v69
    %v405 = vpop.f32.mrf.mxu0
    %v406 = vadd.f32 %v130, %v405
    %v407 = vpop.f32.mrf.mxu0
    %v408 = vadd.f32 %v134, %v407
    %409 = vmatprep.mubr.f32.mxu0 %v205
    %410 = vmatmul.mubr.f32.gmra.mxu0 %v71
    %v411 = vpop.f32.mrf.mxu0
    %v412 = vadd.f32 %v130, %v411
    %v413 = vpop.f32.mrf.mxu0
    %v414 = vadd.f32 %v134, %v413
    %415 = vmatprep.mubr.f32.mxu0 %v208
    %416 = vmatmul.mubr.f32.gmra.mxu0 %v73
    %v417 = vpop.f32.mrf.mxu0
    %v418 = vadd.f32 %v130, %v417
    %v419 = vpop.f32.mrf.mxu0
    %v420 = vadd.f32 %v134, %v419
    %421 = vmatprep.mubr.f32.mxu0 %v211
    %422 = vmatmul.mubr.f32.gmra.mxu0 %v75
    %v423 = vpop.f32.mrf.mxu0
    %v424 = vadd.f32 %v130, %v423
    %v425 = vpop.f32.mrf.mxu0
    %v426 = vadd.f32 %v134, %v425
    %427 = vdwg.mxu0
    %v428 = vmax.f32 %v280, 0.0
    %v429 = vmax.f32 %v282, 0.0
    %v430 = vmax.f32 %v286, 0.0
    %v431 = vmax.f32 %v288, 0.0
    %v432 = vmax.f32 %v292, 0.0
    %v433 = vmax.f32 %v294, 0.0
    %v434 = vmax.f32 %v298, 0.0
    %v435 = vmax.f32 %v300, 0.0
    %v436 = vmax.f32 %v304, 0.0
    %v437 = vmax.f32 %v306, 0.0
    %v438 = vmax.f32 %v310, 0.0
    %v439 = vmax.f32 %v312, 0.0
    %v440 = vmax.f32 %v316, 0.0
    %v441 = vmax.f32 %v318, 0.0
    %v442 = vmax.f32 %v322, 0.0
    %v443 = vmax.f32 %v324, 0.0
    %v444 = vmax.f32 %v328, 0.0
    %v445 = vmax.f32 %v330, 0.0
    %v446 = vmax.f32 %v334, 0.0
    %v447 = vmax.f32 %v336, 0.0
    %v448 = vmax.f32 %v340, 0.0
    %v449 = vmax.f32 %v342, 0.0
    %v450 = vmax.f32 %v346, 0.0
    %v451 = vmax.f32 %v348, 0.0
    %v452 = vmax.f32 %v352, 0.0
    %v453 = vmax.f32 %v354, 0.0
    %v454 = vmax.f32 %v358, 0.0
    %v455 = vmax.f32 %v360, 0.0
    %v456 = vmax.f32 %v364, 0.0
    %v457 = vmax.f32 %v366, 0.0
    %v458 = vmax.f32 %v370, 0.0
    %v459 = vmax.f32 %v372, 0.0
    %v460 = vmax.f32 %v376, 0.0
    %v461 = vmax.f32 %v378, 0.0
    %v462 = vmax.f32 %v382, 0.0
    %v463 = vmax.f32 %v384, 0.0
    %v464 = vmax.f32 %v388, 0.0
    %v465 = vmax.f32 %v390, 0.0
    %v466 = vmax.f32 %v394, 0.0
    %v467 = vmax.f32 %v396, 0.0
    %v468 = vmax.f32 %v400, 0.0
    %v469 = vmax.f32 %v402, 0.0
    %v470 = vmax.f32 %v406, 0.0
    %v471 = vmax.f32 %v408, 0.0
    %v472 = vmax.f32 %v412, 0.0
    %v473 = vmax.f32 %v414, 0.0
    %v474 = vmax.f32 %v418, 0.0
    %v475 = vmax.f32 %v420, 0.0
    %v476 = vmax.f32 %v424, 0.0
    %v477 = vmax.f32 %v426, 0.0
    %v478 = vld [vmem:[%s3] sm:$0xff]
    %v479 = vld [vmem:[%s3 + $0x8] sm:$0xff]
    %v480 = vld [vmem:[%s3 + $0x10] sm:$0xff]
    %v481 = vld [vmem:[%s3 + $0x18] sm:$0xff]
    %v482 = vld [vmem:[%s3 + $0x20] sm:$0xff]
    %v483 = vld [vmem:[%s3 + $0x28] sm:$0xff]
    %v484 = vld [vmem:[%s3 + $0x30] sm:$0xff]
    %v485 = vld [vmem:[%s3 + $0x38] sm:$0xff]
    %v486 = vld [vmem:[%s3 + $0x40] sm:$0xff]
    %v487 = vld [vmem:[%s3 + $0x48] sm:$0xff]
    %v488 = vld [vmem:[%s3 + $0x50] sm:$0xff]
    %v489 = vld [vmem:[%s3 + $0x58] sm:$0xff]
    %v490 = vld [vmem:[%s3 + $0x60] sm:$0xff]
    %v491 = vld [vmem:[%s3 + $0x68] sm:$0xff]
    %v492 = vld [vmem:[%s3 + $0x70] sm:$0xff]
    %v493 = vld [vmem:[%s3 + $0x78] sm:$0xff]
    %v494 = vld [vmem:[%s3 + $0x80] sm:$0xff]
    %v495 = vld [vmem:[%s3 + $0x88] sm:$0xff]
    %v496 = vld [vmem:[%s3 + $0x90] sm:$0xff]
    %v497 = vld [vmem:[%s3 + $0x98] sm:$0xff]
    %v498 = vld [vmem:[%s3 + $0xa0] sm:$0xff]
    %v499 = vld [vmem:[%s3 + $0xa8] sm:$0xff]
    %v500 = vld [vmem:[%s3 + $0xb0] sm:$0xff]
    %v501 = vld [vmem:[%s3 + $0xb8] sm:$0xff]
    %v502 = vld [vmem:[%s3 + $0xc0] sm:$0xff]
    %v503 = vld [vmem:[%s3 + $0xc8] sm:$0xff]
    %v504 = vld [vmem:[%s3 + $0xd0] sm:$0xff]
    %v505 = vld [vmem:[%s3 + $0xd8] sm:$0xff]
    %v506 = vld [vmem:[%s3 + $0xe0] sm:$0xff]
    %v507 = vld [vmem:[%s3 + $0xe8] sm:$0xff]
    %v508 = vld [vmem:[%s3 + $0xf0] sm:$0xff]
    %v509 = vld [vmem:[%s3 + $0xf8] sm:$0xff]
    %v510 = vld [vmem:[%s4] sm:$0x1]
    %v512 = vlaneseq
    %v513 = vshrl.u32 %v512, 7
    %v514 = vsub.s32 0, %v513
    %v515 = vrot.slane %v510, %v514
    %517 = vmatprep.subr.mxu0 0.0
    %518 = vmatpush1.msra.mxu0 %v493
    %519 = vmatprep.subr.mxu0 0.0
    %520 = vmatpush1.msra.mxu0 %v492
    %521 = vmatprep.subr.mxu0 0.0
    %522 = vmatpush1.msra.mxu0 %v491
    %523 = vmatprep.subr.mxu0 0.0
    %524 = vmatpush1.msra.mxu0 %v490
    %525 = vmatprep.subr.mxu0 0.0
    %526 = vmatpush1.msra.mxu0 %v489
    %527 = vmatprep.subr.mxu0 0.0
    %528 = vmatpush1.msra.mxu0 %v488
    %529 = vmatprep.subr.mxu0 0.0
    %530 = vmatpush1.msra.mxu0 %v487
    %531 = vmatprep.subr.mxu0 0.0
    %532 = vmatpush1.msra.mxu0 %v486
    %533 = vmatprep.subr.mxu0 0.0
    %534 = vmatpush1.msra.mxu0 %v485
    %535 = vmatprep.subr.mxu0 0.0
    %536 = vmatpush1.msra.mxu0 %v484
    %537 = vmatprep.subr.mxu0 0.0
    %538 = vmatpush1.msra.mxu0 %v483
    %539 = vmatprep.subr.mxu0 0.0
    %540 = vmatpush1.msra.mxu0 %v482
    %541 = vmatprep.subr.mxu0 0.0
    %542 = vmatpush1.msra.mxu0 %v481
    %543 = vmatprep.subr.mxu0 0.0
    %544 = vmatpush1.msra.mxu0 %v480
    %545 = vmatprep.subr.mxu0 0.0
    %546 = vmatpush1.msra.mxu0 %v479
    %547 = vmatprep.subr.mxu0 0.0
    %548 = vmatpush1.msra.mxu0 %v478
    %549 = vmatprep.subr.mxu0 0.0
    %550 = vmatpush2.msra.mxu0 %v509
    %551 = vmatprep.subr.mxu0 0.0
    %552 = vmatpush2.msra.mxu0 %v508
    %553 = vmatprep.subr.mxu0 0.0
    %554 = vmatpush2.msra.mxu0 %v507
    %555 = vmatprep.subr.mxu0 0.0
    %556 = vmatpush2.msra.mxu0 %v506
    %557 = vmatprep.subr.mxu0 0.0
    %558 = vmatpush2.msra.mxu0 %v505
    %559 = vmatprep.subr.mxu0 0.0
    %560 = vmatpush2.msra.mxu0 %v504
    %561 = vmatprep.subr.mxu0 0.0
    %562 = vmatpush2.msra.mxu0 %v503
    %563 = vmatprep.subr.mxu0 0.0
    %564 = vmatpush2.msra.mxu0 %v502
    %565 = vmatprep.subr.mxu0 0.0
    %566 = vmatpush2.msra.mxu0 %v501
    %567 = vmatprep.subr.mxu0 0.0
    %568 = vmatpush2.msra.mxu0 %v500
    %569 = vmatprep.subr.mxu0 0.0
    %570 = vmatpush2.msra.mxu0 %v499
    %571 = vmatprep.subr.mxu0 0.0
    %572 = vmatpush2.msra.mxu0 %v498
    %573 = vmatprep.subr.mxu0 0.0
    %574 = vmatpush2.msra.mxu0 %v497
    %575 = vmatprep.subr.mxu0 0.0
    %576 = vmatpush2.msra.mxu0 %v496
    %577 = vmatprep.subr.mxu0 0.0
    %578 = vmatpush2.msra.mxu0 %v495
    %579 = vmatprep.subr.mxu0 0.0
    %580 = vmatpush2.msra.mxu0 %v494
    %581 = vmatprep.mubr.f32.mxu0 %v429
    %582 = vmatmul.mubr.f32.gmra.mxu0 %v428
    %v583 = vpop.f32.mrf.mxu0
    %v584 = vadd.f32 %v515, %v583
    %v585 = vpop.f32.mrf.mxu0
    %586 = vmatprep.mubr.f32.mxu0 %v431
    %587 = vmatmul.mubr.f32.gmra.mxu0 %v430
    %v588 = vpop.f32.mrf.mxu0
    %v589 = vadd.f32 %v515, %v588
    %v590 = vpop.f32.mrf.mxu0
    %591 = vmatprep.mubr.f32.mxu0 %v433
    %592 = vmatmul.mubr.f32.gmra.mxu0 %v432
    %v593 = vpop.f32.mrf.mxu0
    %v594 = vadd.f32 %v515, %v593
    %v595 = vpop.f32.mrf.mxu0
    %596 = vmatprep.mubr.f32.mxu0 %v435
    %597 = vmatmul.mubr.f32.gmra.mxu0 %v434
    %v598 = vpop.f32.mrf.mxu0
    %v599 = vadd.f32 %v515, %v598
    %v600 = vpop.f32.mrf.mxu0
    %601 = vmatprep.mubr.f32.mxu0 %v437
    %602 = vmatmul.mubr.f32.gmra.mxu0 %v436
    %v603 = vpop.f32.mrf.mxu0
    %v604 = vadd.f32 %v515, %v603
    %v605 = vpop.f32.mrf.mxu0
    %606 = vmatprep.mubr.f32.mxu0 %v439
    %607 = vmatmul.mubr.f32.gmra.mxu0 %v438
    %v608 = vpop.f32.mrf.mxu0
    %v609 = vadd.f32 %v515, %v608
    %v610 = vpop.f32.mrf.mxu0
    %611 = vmatprep.mubr.f32.mxu0 %v441
    %612 = vmatmul.mubr.f32.gmra.mxu0 %v440
    %v613 = vpop.f32.mrf.mxu0
    %v614 = vadd.f32 %v515, %v613
    %v615 = vpop.f32.mrf.mxu0
    %616 = vmatprep.mubr.f32.mxu0 %v443
    %617 = vmatmul.mubr.f32.gmra.mxu0 %v442
    %v618 = vpop.f32.mrf.mxu0
    %v619 = vadd.f32 %v515, %v618
    %v620 = vpop.f32.mrf.mxu0
    %621 = vmatprep.mubr.f32.mxu0 %v445
    %622 = vmatmul.mubr.f32.gmra.mxu0 %v444
    %v623 = vpop.f32.mrf.mxu0
    %v624 = vadd.f32 %v515, %v623
    %v625 = vpop.f32.mrf.mxu0
    %626 = vmatprep.mubr.f32.mxu0 %v447
    %627 = vmatmul.mubr.f32.gmra.mxu0 %v446
    %v628 = vpop.f32.mrf.mxu0
    %v629 = vadd.f32 %v515, %v628
    %v630 = vpop.f32.mrf.mxu0
    %631 = vmatprep.mubr.f32.mxu0 %v449
    %632 = vmatmul.mubr.f32.gmra.mxu0 %v448
    %v633 = vpop.f32.mrf.mxu0
    %v634 = vadd.f32 %v515, %v633
    %v635 = vpop.f32.mrf.mxu0
    %636 = vmatprep.mubr.f32.mxu0 %v451
    %637 = vmatmul.mubr.f32.gmra.mxu0 %v450
    %v638 = vpop.f32.mrf.mxu0
    %v639 = vadd.f32 %v515, %v638
    %v640 = vpop.f32.mrf.mxu0
    %641 = vmatprep.mubr.f32.mxu0 %v453
    %642 = vmatmul.mubr.f32.gmra.mxu0 %v452
    %v643 = vpop.f32.mrf.mxu0
    %v644 = vadd.f32 %v515, %v643
    %v645 = vpop.f32.mrf.mxu0
    %646 = vmatprep.mubr.f32.mxu0 %v455
    %647 = vmatmul.mubr.f32.gmra.mxu0 %v454
    %v648 = vpop.f32.mrf.mxu0
    %v649 = vadd.f32 %v515, %v648
    %v650 = vpop.f32.mrf.mxu0
    %651 = vmatprep.mubr.f32.mxu0 %v457
    %652 = vmatmul.mubr.f32.gmra.mxu0 %v456
    %v653 = vpop.f32.mrf.mxu0
    %v654 = vadd.f32 %v515, %v653
    %v655 = vpop.f32.mrf.mxu0
    %656 = vmatprep.mubr.f32.mxu0 %v459
    %657 = vmatmul.mubr.f32.gmra.mxu0 %v458
    %v658 = vpop.f32.mrf.mxu0
    %v659 = vadd.f32 %v515, %v658
    %v660 = vpop.f32.mrf.mxu0
    %661 = vmatprep.mubr.f32.mxu0 %v461
    %662 = vmatmul.mubr.f32.gmra.mxu0 %v460
    %v663 = vpop.f32.mrf.mxu0
    %v664 = vadd.f32 %v515, %v663
    %v665 = vpop.f32.mrf.mxu0
    %666 = vmatprep.mubr.f32.mxu0 %v463
    %667 = vmatmul.mubr.f32.gmra.mxu0 %v462
    %v668 = vpop.f32.mrf.mxu0
    %v669 = vadd.f32 %v515, %v668
    %v670 = vpop.f32.mrf.mxu0
    %671 = vmatprep.mubr.f32.mxu0 %v465
    %672 = vmatmul.mubr.f32.gmra.mxu0 %v464
    %v673 = vpop.f32.mrf.mxu0
    %v674 = vadd.f32 %v515, %v673
    %v675 = vpop.f32.mrf.mxu0
    %676 = vmatprep.mubr.f32.mxu0 %v467
    %677 = vmatmul.mubr.f32.gmra.mxu0 %v466
    %v678 = vpop.f32.mrf.mxu0
    %v679 = vadd.f32 %v515, %v678
    %v680 = vpop.f32.mrf.mxu0
    %681 = vmatprep.mubr.f32.mxu0 %v469
    %682 = vmatmul.mubr.f32.gmra.mxu0 %v468
    %v683 = vpop.f32.mrf.mxu0
    %v684 = vadd.f32 %v515, %v683
    %v685 = vpop.f32.mrf.mxu0
    %686 = vmatprep.mubr.f32.mxu0 %v471
    %687 = vmatmul.mubr.f32.gmra.mxu0 %v470
    %v688 = vpop.f32.mrf.mxu0
    %v689 = vadd.f32 %v515, %v688
    %v690 = vpop.f32.mrf.mxu0
    %691 = vmatprep.mubr.f32.mxu0 %v473
    %692 = vmatmul.mubr.f32.gmra.mxu0 %v472
    %v693 = vpop.f32.mrf.mxu0
    %v694 = vadd.f32 %v515, %v693
    %v695 = vpop.f32.mrf.mxu0
    %696 = vmatprep.mubr.f32.mxu0 %v475
    %697 = vmatmul.mubr.f32.gmra.mxu0 %v474
    %v698 = vpop.f32.mrf.mxu0
    %v699 = vadd.f32 %v515, %v698
    %v700 = vpop.f32.mrf.mxu0
    %701 = vmatprep.mubr.f32.mxu0 %v477
    %702 = vmatmul.mubr.f32.gmra.mxu0 %v476
    %v703 = vpop.f32.mrf.mxu0
    %v704 = vadd.f32 %v515, %v703
    %v705 = vpop.f32.mrf.mxu0
    %706 = vdwg.mxu0
    %v707 = vmax.f32 %v584, 0.0
    %v708 = vmax.f32 %v589, 0.0
    %v709 = vmax.f32 %v594, 0.0
    %v710 = vmax.f32 %v599, 0.0
    %v711 = vmax.f32 %v604, 0.0
    %v712 = vmax.f32 %v609, 0.0
    %v713 = vmax.f32 %v614, 0.0
    %v714 = vmax.f32 %v619, 0.0
    %v715 = vmax.f32 %v624, 0.0
    %v716 = vmax.f32 %v629, 0.0
    %v717 = vmax.f32 %v634, 0.0
    %v718 = vmax.f32 %v639, 0.0
    %v719 = vmax.f32 %v644, 0.0
    %v720 = vmax.f32 %v649, 0.0
    %v721 = vmax.f32 %v654, 0.0
    %v722 = vmax.f32 %v659, 0.0
    %v723 = vmax.f32 %v664, 0.0
    %v724 = vmax.f32 %v669, 0.0
    %v725 = vmax.f32 %v674, 0.0
    %v726 = vmax.f32 %v679, 0.0
    %v727 = vmax.f32 %v684, 0.0
    %v728 = vmax.f32 %v689, 0.0
    %v729 = vmax.f32 %v694, 0.0
    %v730 = vmax.f32 %v699, 0.0
    %v731 = vmax.f32 %v704, 0.0
    %v732 = vld [vmem:[%s5] sm:$0xff]
    %v733 = vld [vmem:[%s5 + $0x8] sm:$0xff]
    %v734 = vld [vmem:[%s5 + $0x10] sm:$0xff]
    %v735 = vld [vmem:[%s5 + $0x18] sm:$0xff]
    %v736 = vld [vmem:[%s5 + $0x20] sm:$0xff]
    %v737 = vld [vmem:[%s5 + $0x28] sm:$0xff]
    %v738 = vld [vmem:[%s5 + $0x30] sm:$0xff]
    %v739 = vld [vmem:[%s5 + $0x38] sm:$0xff]
    %v740 = vld [vmem:[%s5 + $0x40] sm:$0xff]
    %v741 = vld [vmem:[%s5 + $0x48] sm:$0xff]
    %v742 = vld [vmem:[%s5 + $0x50] sm:$0xff]
    %v743 = vld [vmem:[%s5 + $0x58] sm:$0xff]
    %v744 = vld [vmem:[%s5 + $0x60] sm:$0xff]
    %v745 = vld [vmem:[%s5 + $0x68] sm:$0xff]
    %v746 = vld [vmem:[%s5 + $0x70] sm:$0xff]
    %v747 = vld [vmem:[%s5 + $0x78] sm:$0xff]
    %v748 = vld [vmem:[%s6] sm:$0x1]
    %v750 = vlaneseq
    %v751 = vshrl.u32 %v750, 7
    %v752 = vsub.s32 0, %v751
    %v753 = vrot.slane %v748, %v752
    %755 = vmatprep.subr.mxu0 0.0
    %756 = vmatpush1.msra.mxu0 %v747
    %757 = vmatprep.subr.mxu0 0.0
    %758 = vmatpush1.msra.mxu0 %v746
    %759 = vmatprep.subr.mxu0 0.0
    %760 = vmatpush1.msra.mxu0 %v745
    %761 = vmatprep.subr.mxu0 0.0
    %762 = vmatpush1.msra.mxu0 %v744
    %763 = vmatprep.subr.mxu0 0.0
    %764 = vmatpush1.msra.mxu0 %v743
    %765 = vmatprep.subr.mxu0 0.0
    %766 = vmatpush1.msra.mxu0 %v742
    %767 = vmatprep.subr.mxu0 0.0
    %768 = vmatpush1.msra.mxu0 %v741
    %769 = vmatprep.subr.mxu0 0.0
    %770 = vmatpush1.msra.mxu0 %v740
    %771 = vmatprep.subr.mxu0 0.0
    %772 = vmatpush1.msra.mxu0 %v739
    %773 = vmatprep.subr.mxu0 0.0
    %774 = vmatpush1.msra.mxu0 %v738
    %775 = vmatprep.subr.mxu0 0.0
    %776 = vmatpush1.msra.mxu0 %v737
    %777 = vmatprep.subr.mxu0 0.0
    %778 = vmatpush1.msra.mxu0 %v736
    %779 = vmatprep.subr.mxu0 0.0
    %780 = vmatpush1.msra.mxu0 %v735
    %781 = vmatprep.subr.mxu0 0.0
    %782 = vmatpush1.msra.mxu0 %v734
    %783 = vmatprep.subr.mxu0 0.0
    %784 = vmatpush1.msra.mxu0 %v733
    %785 = vmatprep.subr.mxu0 0.0
    %786 = vmatpush1.msra.mxu0 %v732
    %787 = vmatprep.subr.mxu0 0.0
    %788 = vmatpush2.msra.mxu0 0.0
    %789 = vmatprep.subr.mxu0 0.0
    %790 = vmatpush2.msra.mxu0 0.0
    %791 = vmatprep.subr.mxu0 0.0
    %792 = vmatpush2.msra.mxu0 0.0
    %793 = vmatprep.subr.mxu0 0.0
    %794 = vmatpush2.msra.mxu0 0.0
    %795 = vmatprep.subr.mxu0 0.0
    %796 = vmatpush2.msra.mxu0 0.0
    %797 = vmatprep.subr.mxu0 0.0
    %798 = vmatpush2.msra.mxu0 0.0
    %799 = vmatprep.subr.mxu0 0.0
    %800 = vmatpush2.msra.mxu0 0.0
    %801 = vmatprep.subr.mxu0 0.0
    %802 = vmatpush2.msra.mxu0 0.0
    %803 = vmatprep.subr.mxu0 0.0
    %804 = vmatpush2.msra.mxu0 0.0
    %805 = vmatprep.subr.mxu0 0.0
    %806 = vmatpush2.msra.mxu0 0.0
    %807 = vmatprep.subr.mxu0 0.0
    %808 = vmatpush2.msra.mxu0 0.0
    %809 = vmatprep.subr.mxu0 0.0
    %810 = vmatpush2.msra.mxu0 0.0
    %811 = vmatprep.subr.mxu0 0.0
    %812 = vmatpush2.msra.mxu0 0.0
    %813 = vmatprep.subr.mxu0 0.0
    %814 = vmatpush2.msra.mxu0 0.0
    %815 = vmatprep.subr.mxu0 0.0
    %816 = vmatpush2.msra.mxu0 0.0
    %817 = vmatprep.subr.mxu0 0.0
    %818 = vmatpush2.msra.mxu0 0.0
    %819 = vmatprep.mubr.f32.mxu0 0.0
    %820 = vmatmul.mubr.f32.gmra.mxu0 %v707
    %v821 = vpop.f32.mrf.mxu0
    %v822 = vadd.f32 %v753, %v821
    %v823 = vpop.f32.mrf.mxu0
    %824 = vmatprep.mubr.f32.mxu0 0.0
    %825 = vmatmul.mubr.f32.gmra.mxu0 %v708
    %v826 = vpop.f32.mrf.mxu0
    %v827 = vadd.f32 %v753, %v826
    %v828 = vpop.f32.mrf.mxu0
    %829 = vmatprep.mubr.f32.mxu0 0.0
    %830 = vmatmul.mubr.f32.gmra.mxu0 %v709
    %v831 = vpop.f32.mrf.mxu0
    %v832 = vadd.f32 %v753, %v831
    %v833 = vpop.f32.mrf.mxu0
    %834 = vmatprep.mubr.f32.mxu0 0.0
    %835 = vmatmul.mubr.f32.gmra.mxu0 %v710
    %v836 = vpop.f32.mrf.mxu0
    %v837 = vadd.f32 %v753, %v836
    %v838 = vpop.f32.mrf.mxu0
    %839 = vmatprep.mubr.f32.mxu0 0.0
    %840 = vmatmul.mubr.f32.gmra.mxu0 %v711
    %v841 = vpop.f32.mrf.mxu0
    %v842 = vadd.f32 %v753, %v841
    %v843 = vpop.f32.mrf.mxu0
    %844 = vmatprep.mubr.f32.mxu0 0.0
    %845 = vmatmul.mubr.f32.gmra.mxu0 %v712
    %v846 = vpop.f32.mrf.mxu0
    %v847 = vadd.f32 %v753, %v846
    %v848 = vpop.f32.mrf.mxu0
    %849 = vmatprep.mubr.f32.mxu0 0.0
    %850 = vmatmul.mubr.f32.gmra.mxu0 %v713
    %v851 = vpop.f32.mrf.mxu0
    %v852 = vadd.f32 %v753, %v851
    %v853 = vpop.f32.mrf.mxu0
    %854 = vmatprep.mubr.f32.mxu0 0.0
    %855 = vmatmul.mubr.f32.gmra.mxu0 %v714
    %v856 = vpop.f32.mrf.mxu0
    %v857 = vadd.f32 %v753, %v856
    %v858 = vpop.f32.mrf.mxu0
    %859 = vmatprep.mubr.f32.mxu0 0.0
    %860 = vmatmul.mubr.f32.gmra.mxu0 %v715
    %v861 = vpop.f32.mrf.mxu0
    %v862 = vadd.f32 %v753, %v861
    %v863 = vpop.f32.mrf.mxu0
    %864 = vmatprep.mubr.f32.mxu0 0.0
    %865 = vmatmul.mubr.f32.gmra.mxu0 %v716
    %v866 = vpop.f32.mrf.mxu0
    %v867 = vadd.f32 %v753, %v866
    %v868 = vpop.f32.mrf.mxu0
    %869 = vmatprep.mubr.f32.mxu0 0.0
    %870 = vmatmul.mubr.f32.gmra.mxu0 %v717
    %v871 = vpop.f32.mrf.mxu0
    %v872 = vadd.f32 %v753, %v871
    %v873 = vpop.f32.mrf.mxu0
    %874 = vmatprep.mubr.f32.mxu0 0.0
    %875 = vmatmul.mubr.f32.gmra.mxu0 %v718
    %v876 = vpop.f32.mrf.mxu0
    %v877 = vadd.f32 %v753, %v876
    %v878 = vpop.f32.mrf.mxu0
    %879 = vmatprep.mubr.f32.mxu0 0.0
    %880 = vmatmul.mubr.f32.gmra.mxu0 %v719
    %v881 = vpop.f32.mrf.mxu0
    %v882 = vadd.f32 %v753, %v881
    %v883 = vpop.f32.mrf.mxu0
    %884 = vmatprep.mubr.f32.mxu0 0.0
    %885 = vmatmul.mubr.f32.gmra.mxu0 %v720
    %v886 = vpop.f32.mrf.mxu0
    %v887 = vadd.f32 %v753, %v886
    %v888 = vpop.f32.mrf.mxu0
    %889 = vmatprep.mubr.f32.mxu0 0.0
    %890 = vmatmul.mubr.f32.gmra.mxu0 %v721
    %v891 = vpop.f32.mrf.mxu0
    %v892 = vadd.f32 %v753, %v891
    %v893 = vpop.f32.mrf.mxu0
    %894 = vmatprep.mubr.f32.mxu0 0.0
    %895 = vmatmul.mubr.f32.gmra.mxu0 %v722
    %v896 = vpop.f32.mrf.mxu0
    %v897 = vadd.f32 %v753, %v896
    %v898 = vpop.f32.mrf.mxu0
    %899 = vmatprep.mubr.f32.mxu0 0.0
    %900 = vmatmul.mubr.f32.gmra.mxu0 %v723
    %v901 = vpop.f32.mrf.mxu0
    %v902 = vadd.f32 %v753, %v901
    %v903 = vpop.f32.mrf.mxu0
    %904 = vmatprep.mubr.f32.mxu0 0.0
    %905 = vmatmul.mubr.f32.gmra.mxu0 %v724
    %v906 = vpop.f32.mrf.mxu0
    %v907 = vadd.f32 %v753, %v906
    %v908 = vpop.f32.mrf.mxu0
    %909 = vmatprep.mubr.f32.mxu0 0.0
    %910 = vmatmul.mubr.f32.gmra.mxu0 %v725
    %v911 = vpop.f32.mrf.mxu0
    %v912 = vadd.f32 %v753, %v911
    %v913 = vpop.f32.mrf.mxu0
    %914 = vmatprep.mubr.f32.mxu0 0.0
    %915 = vmatmul.mubr.f32.gmra.mxu0 %v726
    %v916 = vpop.f32.mrf.mxu0
    %v917 = vadd.f32 %v753, %v916
    %v918 = vpop.f32.mrf.mxu0
    %919 = vmatprep.mubr.f32.mxu0 0.0
    %920 = vmatmul.mubr.f32.gmra.mxu0 %v727
    %v921 = vpop.f32.mrf.mxu0
    %v922 = vadd.f32 %v753, %v921
    %v923 = vpop.f32.mrf.mxu0
    %924 = vmatprep.mubr.f32.mxu0 0.0
    %925 = vmatmul.mubr.f32.gmra.mxu0 %v728
    %v926 = vpop.f32.mrf.mxu0
    %v927 = vadd.f32 %v753, %v926
    %v928 = vpop.f32.mrf.mxu0
    %929 = vmatprep.mubr.f32.mxu0 0.0
    %930 = vmatmul.mubr.f32.gmra.mxu0 %v729
    %v931 = vpop.f32.mrf.mxu0
    %v932 = vadd.f32 %v753, %v931
    %v933 = vpop.f32.mrf.mxu0
    %934 = vmatprep.mubr.f32.mxu0 0.0
    %935 = vmatmul.mubr.f32.gmra.mxu0 %v730
    %v936 = vpop.f32.mrf.mxu0
    %v937 = vadd.f32 %v753, %v936
    %v938 = vpop.f32.mrf.mxu0
    %939 = vmatprep.mubr.f32.mxu0 0.0
    %940 = vmatmul.mubr.f32.gmra.mxu0 %v731
    %v941 = vpop.f32.mrf.mxu0
    %v942 = vadd.f32 %v753, %v941
    %v943 = vpop.f32.mrf.mxu0
    %944 = vdwg.mxu0
    %945 = vst [vmem:[#allocation2] sm:$0xff] %v822
    %946 = vst [vmem:[#allocation2 + $0x8] sm:$0xff] %v827
    %947 = vst [vmem:[#allocation2 + $0x10] sm:$0xff] %v832
    %948 = vst [vmem:[#allocation2 + $0x18] sm:$0xff] %v837
    %949 = vst [vmem:[#allocation2 + $0x20] sm:$0xff] %v842
    %950 = vst [vmem:[#allocation2 + $0x28] sm:$0xff] %v847
    %951 = vst [vmem:[#allocation2 + $0x30] sm:$0xff] %v852
    %952 = vst [vmem:[#allocation2 + $0x38] sm:$0xff] %v857
    %953 = vst [vmem:[#allocation2 + $0x40] sm:$0xff] %v862
    %954 = vst [vmem:[#allocation2 + $0x48] sm:$0xff] %v867
    %955 = vst [vmem:[#allocation2 + $0x50] sm:$0xff] %v872
    %956 = vst [vmem:[#allocation2 + $0x58] sm:$0xff] %v877
    %957 = vst [vmem:[#allocation2 + $0x60] sm:$0xff] %v882
    %958 = vst [vmem:[#allocation2 + $0x68] sm:$0xff] %v887
    %959 = vst [vmem:[#allocation2 + $0x70] sm:$0xff] %v892
    %960 = vst [vmem:[#allocation2 + $0x78] sm:$0xff] %v897
    %961 = vst [vmem:[#allocation2 + $0x80] sm:$0xff] %v902
    %962 = vst [vmem:[#allocation2 + $0x88] sm:$0xff] %v907
    %963 = vst [vmem:[#allocation2 + $0x90] sm:$0xff] %v912
    %964 = vst [vmem:[#allocation2 + $0x98] sm:$0xff] %v917
    %965 = vst [vmem:[#allocation2 + $0xa0] sm:$0xff] %v922
    %966 = vst [vmem:[#allocation2 + $0xa8] sm:$0xff] %v927
    %967 = vst [vmem:[#allocation2 + $0xb0] sm:$0xff] %v932
    %968 = vst [vmem:[#allocation2 + $0xb8] sm:$0xff] %v937
    %969 = vst [vmem:[#allocation2 + $0xc0] sm:$0xff] %v942
    // Predicated region
    $region30: #{tpu_custom_call.1} parent=1 // pred_check
      _
    $region31: #{tpu_custom_call.1} parent=1 // pred_check_branch
      %971 = sbr.rel (0) target = $region33
    $region32: #{tpu_custom_call.1} parent=1 // pred_region
      %s973 = ssub.s32 3200, 3200
      %974 = vsyncadd [#allocation3], %s973
      %s975 = sshll.u32 [#allocation2], 4
      %s976 = int_to_ptr.vmem [resolvable:$true] %s975
      %981 = dma.vmem_to_hbm [thread:$0]  %s976, 3200, %s7, [#allocation3], 128, 128, 8
    $region33: #{tpu_custom_call.1} parent=1 // pred_fallthru
      _
    // Predicated region
    $region34: #{tpu_custom_call.1} parent=1 // pred_check
      _
    $region35: #{tpu_custom_call.1} parent=1 // pred_check_branch
      %983 = sbr.rel (0) target = $region37
    $region36: #{tpu_custom_call.1} parent=1 // pred_region
      %984 = dma.done [#allocation3], 3200
    $region37: #{tpu_custom_call.1} parent=1 // pred_fallthru
      _
    %985 = vsyncpa [#allocation3], 1

</llo_original>
